<compile_context>
chip_gen: v7x
topology: tpu7x:2x2x1
jax: 0.10.0
libtpu: 0.0.40
codegen_flags: <defaults>
</compile_context>

<pallas_src>
import math
from functools import partial

import jax
import jax.numpy as jnp
from jax import lax
from jax.experimental import pallas as pl
from jax.experimental.pallas import tpu as pltpu

EPS = 1e-5


def _detect_vmem_bytes():
    try:
        return int(pltpu.get_tpu_info().vmem_capacity_bytes)
    except Exception:
        return 64 * 1024 * 1024   # conservative default (v7x per-core VMEM)


_VMEM_PHYS = _detect_vmem_bytes()
VMEM_LIMIT = int(min(_VMEM_PHYS * 0.6, 96 * 1024 * 1024))
_BIG_VMEM = _VMEM_PHYS >= 96 * 1024 * 1024           # v5e / v6e (128 MiB)
_TM_TARGET = 256
_TN_TARGET = 512 if _BIG_VMEM else 256
_TK_TARGET = 1024 if _BIG_VMEM else 512
_TH_TARGET = 512 if _BIG_VMEM else 256                # shrink FFN hidden tile on v7x
_TKV_TARGET = 512


def _pick_tile(dim, target, mult):
    """Largest tile <= target that divides dim and is a multiple of `mult`;
    falls back to the full dim (always a legal full-extent block)."""
    if dim <= target:
        return dim
    t = (target // mult) * mult
    while t >= mult:
        if dim % t == 0:
            return t
        t -= mult
    if dim > 4 * target:   # guard: don't silently blow the per-step VMEM budget
        raise ValueError(
            f"dim={dim} has no tile divisor <= {target}; pad it to a multiple "
            f"of {mult} to keep per-step VMEM bounded")
    return dim


def _pair_swap_matrix(n):
    """R such that (y @ R)[2i] = -y[2i+1], (y @ R)[2i+1] = y[2i] (bf16, exact)."""
    i = jnp.arange(n)
    k = i[:, None]
    j = i[None, :]
    plus = (j % 2 == 1) & (k == j - 1)
    minus = (j % 2 == 0) & (k == j + 1)
    return (plus.astype(jnp.float32) - minus.astype(jnp.float32)).astype(jnp.bfloat16)


# --------------------------- Pallas kernels ---------------------------------

def _norm_qkv_rope_kernel(x_ref, g_ref, w_ref, cos_ref, sin_ref, rot_ref,
                          o_ref, xn_sc, *, eps, qk_cols, tn):
    # fused RMSNorm + concatenated QKV projection + RoPE epilogue.
    # Norm is computed once per row tile (j == 0) and cached in VMEM scratch.
    j = pl.program_id(1)

    @pl.when(j == 0)
    def _():
        x = x_ref[...].astype(jnp.float32)
        ms = jnp.mean(x * x, axis=-1, keepdims=True)
        xn_sc[...] = ((x * lax.rsqrt(ms + eps)) * g_ref[...]).astype(jnp.bfloat16)

    y = jnp.dot(xn_sc[...], w_ref[...], preferred_element_type=jnp.float32)

    @pl.when(j * tn < qk_cols)                  # tile touches Q/K columns -> RoPE
    def _():
        yr = jnp.dot(y.astype(jnp.bfloat16), rot_ref[...],
                     preferred_element_type=jnp.float32)
        # cos=1 / sin=0 on V columns makes this an exact identity there.
        o_ref[...] = (y * cos_ref[...] + yr * sin_ref[...]).astype(o_ref.dtype)

    @pl.when(j * tn >= qk_cols)                 # pure V tile -> skip the swap matmul
    def _():
        o_ref[...] = y.astype(o_ref.dtype)


def norm_qkv_rope(x2d, gamma_row, w_t, cos_full, sin_full, *, qk_cols):
    # x2d: (N, D) f32, gamma_row: (1, D) f32, w_t: (D, Dout) bf16,
    # cos/sin: (N, Dout) f32 -> (N, Dout) bf16 (RoPE applied on Q/K columns)
    N, D = x2d.shape
    Dout = w_t.shape[1]
    tm = _pick_tile(N, _TM_TARGET, 8)
    tn = _pick_tile(Dout, _TN_TARGET, 128)
    assert tn % 2 == 0
    rot = _pair_swap_matrix(tn)
    return pl.pallas_call(
        partial(_norm_qkv_rope_kernel, eps=EPS, qk_cols=qk_cols, tn=tn),
        grid=(N // tm, Dout // tn),
        in_specs=[
            pl.BlockSpec((tm, D), lambda i, j: (i, 0)),
            pl.BlockSpec((1, D), lambda i, j: (0, 0)),
            pl.BlockSpec((D, tn), lambda i, j: (0, j)),
            pl.BlockSpec((tm, tn), lambda i, j: (i, j)),
            pl.BlockSpec((tm, tn), lambda i, j: (i, j)),
            pl.BlockSpec((tn, tn), lambda i, j: (0, 0)),
        ],
        out_specs=pl.BlockSpec((tm, tn), lambda i, j: (i, j)),
        out_shape=jax.ShapeDtypeStruct((N, Dout), jnp.bfloat16),
        scratch_shapes=[pltpu.VMEM((tm, D), jnp.bfloat16)],
        compiler_params=pltpu.CompilerParams(
            dimension_semantics=("parallel", "arbitrary"),
            vmem_limit_bytes=VMEM_LIMIT),
    )(x2d, gamma_row, w_t, cos_full, sin_full, rot)


def _matmul_res_kernel(x_ref, w_ref, r_ref, o_ref, acc_ref):
    # bf16 x bf16 matmul, f32 accumulate, residual add fused into the epilogue.
    k = pl.program_id(2)

    @pl.when(k == 0)
    def _():
        acc_ref[...] = jnp.zeros_like(acc_ref)

    acc_ref[...] += jnp.dot(x_ref[...], w_ref[...],
                            preferred_element_type=jnp.float32)

    @pl.when(k == pl.num_programs(2) - 1)
    def _():
        o_ref[...] = (r_ref[...] + acc_ref[...]).astype(o_ref.dtype)


def linear_residual(x2d, w_t, res2d):
    # x2d: (N, K) bf16, w_t: (K, Dout) bf16, res2d: (N, Dout) f32 -> f32
    N, K = x2d.shape
    Dout = w_t.shape[1]
    tm = _pick_tile(N, _TM_TARGET, 8)
    tn = _pick_tile(Dout, _TN_TARGET, 128)
    tk = _pick_tile(K, _TK_TARGET, 128)
    return pl.pallas_call(
        _matmul_res_kernel,
        grid=(N // tm, Dout // tn, K // tk),
        in_specs=[
            pl.BlockSpec((tm, tk), lambda i, j, k: (i, k)),
            pl.BlockSpec((tk, tn), lambda i, j, k: (k, j)),
            pl.BlockSpec((tm, tn), lambda i, j, k: (i, j)),
        ],
        out_specs=pl.BlockSpec((tm, tn), lambda i, j, k: (i, j)),
        out_shape=jax.ShapeDtypeStruct((N, Dout), jnp.float32),
        scratch_shapes=[pltpu.VMEM((tm, tn), jnp.float32)],
        compiler_params=pltpu.CompilerParams(
            dimension_semantics=("parallel", "parallel", "arbitrary"),
            vmem_limit_bytes=VMEM_LIMIT),
    )(x2d, w_t, res2d)


def _norm_ffn_kernel(x_ref, g_ref, w1_ref, w3_ref, w2_ref, o_ref,
                     acc_ref, xn_sc, *, eps):
    # fused RMSNorm + SwiGLU FFN + residual, tiled over the hidden dimension.
    t = pl.program_id(1)

    @pl.when(t == 0)
    def _():
        acc_ref[...] = jnp.zeros_like(acc_ref)
        x = x_ref[...].astype(jnp.float32)
        ms = jnp.mean(x * x, axis=-1, keepdims=True)
        xn_sc[...] = ((x * lax.rsqrt(ms + eps)) * g_ref[...]).astype(jnp.bfloat16)

    xn = xn_sc[...]
    h = jnp.dot(xn, w1_ref[...], preferred_element_type=jnp.float32)
    g = jnp.dot(xn, w3_ref[...], preferred_element_type=jnp.float32)
    a = (h * jax.nn.sigmoid(h)) * g                       # SiLU * gate in f32
    acc_ref[...] += jnp.dot(a.astype(jnp.bfloat16), w2_ref[...],
                            preferred_element_type=jnp.float32)

    @pl.when(t == pl.num_programs(1) - 1)
    def _():
        o_ref[...] = (x_ref[...] + acc_ref[...]).astype(o_ref.dtype)   # + residual


def norm_ffn_residual(x2d, gamma_row, w1_t, w3_t, w2_t):
    N, D = x2d.shape
    Hdn = w1_t.shape[1]
    tm = _pick_tile(N, _TM_TARGET, 8)
    th = _pick_tile(Hdn, _TH_TARGET, 128)
    return pl.pallas_call(
        partial(_norm_ffn_kernel, eps=EPS),
        grid=(N // tm, Hdn // th),
        in_specs=[
            pl.BlockSpec((tm, D), lambda i, t: (i, 0)),
            pl.BlockSpec((1, D), lambda i, t: (0, 0)),
            pl.BlockSpec((D, th), lambda i, t: (0, t)),
            pl.BlockSpec((D, th), lambda i, t: (0, t)),
            pl.BlockSpec((th, D), lambda i, t: (t, 0)),
        ],
        out_specs=pl.BlockSpec((tm, D), lambda i, t: (i, 0)),
        out_shape=jax.ShapeDtypeStruct((N, D), jnp.float32),
        scratch_shapes=[pltpu.VMEM((tm, D), jnp.float32),
                        pltpu.VMEM((tm, D), jnp.bfloat16)],
        compiler_params=pltpu.CompilerParams(
            dimension_semantics=("parallel", "arbitrary"),
            vmem_limit_bytes=VMEM_LIMIT),
    )(x2d, gamma_row, w1_t, w3_t, w2_t)


def _sdpa_kernel(q_ref, k_ref, v_ref, o_ref, q_sc, m_sc, l_sc, acc_sc,
                 *, n_groups, repeats):
    # Flash-style online softmax over KV tiles (grid axis 1).
    # GQA: static unrolled loop over kv heads; the group's `repeats` query
    # heads are folded into the rows of a (repeats*S, hd) MXU operand.
    # q_ref:(S,H,hd) bf16  k_ref/v_ref:(tkv,Hkv,hd) bf16  o_ref:(S,H,hd) bf16
    t = pl.program_id(1)
    S = q_ref.shape[0]

    @pl.when(t == 0)
    def _():
        m_sc[...] = jnp.full(m_sc.shape, -jnp.inf, jnp.float32)
        l_sc[...] = jnp.zeros_like(l_sc)
        acc_sc[...] = jnp.zeros_like(acc_sc)
        for g in range(n_groups):
            for r in range(repeats):
                # fold query head (g, r) into rows [r*S, (r+1)*S) of group g
                q_sc[g, r * S:(r + 1) * S, :] = q_ref[:, g * repeats + r, :]

    for g in range(n_groups):
        qg = q_sc[g]                                   # (repeats*S, hd) bf16
        kg = k_ref[:, g, :]                            # (tkv, hd) bf16
        vg = v_ref[:, g, :]
        s = lax.dot_general(qg, kg, (((1,), (1,)), ((), ())),
                            preferred_element_type=jnp.float32)   # (rep*S, tkv)
        m_prev = m_sc[g]
        m_new = jnp.maximum(m_prev, jnp.max(s, axis=-1, keepdims=True))
        alpha = jnp.exp(m_prev - m_new)
        p = jnp.exp(s - m_new)
        l_sc[g] = alpha * l_sc[g] + jnp.sum(p, axis=-1, keepdims=True)
        acc_sc[g] = alpha * acc_sc[g] + jnp.dot(
            p.astype(jnp.bfloat16), vg, preferred_element_type=jnp.float32)
        m_sc[g] = m_new

    @pl.when(t == pl.num_programs(1) - 1)
    def _():
        for g in range(n_groups):
            og = (acc_sc[g] *
                  pl.reciprocal(l_sc[g], approx=True)).astype(o_ref.dtype)
            for r in range(repeats):
                o_ref[:, g * repeats + r, :] = og[r * S:(r + 1) * S, :]
    # TODO(synk): additive / causal attention mask not applied (mask=None path).


def sdpa(q, k, v):
    # q: (B, S, H, hd) bf16 (1/sqrt(hd) already folded into wq)
    # k, v: (B, Skv, Hkv, hd) bf16  ->  (B, S, H, hd) bf16
    B, S, H, hd = q.shape
    Skv, Hkv = k.shape[1], k.shape[2]
    rep = H // Hkv
    tkv = _pick_tile(Skv, _TKV_TARGET, 8)
    qo_spec = pl.BlockSpec((None, S, H, hd), lambda b, t: (b, 0, 0, 0))
    kv_spec = pl.BlockSpec((None, tkv, Hkv, hd), lambda b, t: (b, t, 0, 0))
    return pl.pallas_call(
        partial(_sdpa_kernel, n_groups=Hkv, repeats=rep),
        grid=(B, Skv // tkv),
        in_specs=[qo_spec, kv_spec, kv_spec],
        out_specs=pl.BlockSpec((None, S, H, hd), lambda b, t: (b, 0, 0, 0)),
        out_shape=jax.ShapeDtypeStruct((B, S, H, hd), jnp.bfloat16),
        scratch_shapes=[pltpu.VMEM((Hkv, rep * S, hd), jnp.bfloat16),
                        pltpu.VMEM((Hkv, rep * S, 1), jnp.float32),
                        pltpu.VMEM((Hkv, rep * S, 1), jnp.float32),
                        pltpu.VMEM((Hkv, rep * S, hd), jnp.float32)],
        compiler_params=pltpu.CompilerParams(
            dimension_semantics=("parallel", "arbitrary"),
            vmem_limit_bytes=VMEM_LIMIT),
    )(q, k, v)


# ------------------------------ JAX glue -------------------------------------

def rope_tables(model_dim, seq_limit, scaling=10000.0):
    # matches RotatoryPositionalEncoding.__init__ (exponent uses model_dim)
    freqs = jnp.exp(-jnp.arange(0, model_dim, 2, dtype=jnp.float32)
                    * math.log(scaling) / model_dim)            # (D/2,)
    angles = jnp.outer(jnp.arange(seq_limit, dtype=jnp.float32), freqs)
    return jnp.cos(angles), jnp.sin(angles)                     # (seq_limit, D/2)


def init_params(key, settings):
    D = settings["model_dimension"]
    H = settings["number_of_heads"]
    Hkv = settings["number_of_kv_heads"]
    hd = D // H
    mo = settings["multiple_of"]
    hidden = mo * ((settings["hidden_dimension"] + mo - 1) // mo)

    keys = jax.random.split(key, 7)

    def lin(k, out_dim, in_dim):  # PyTorch Linear-style (out, in), uniform init
        bound = 1.0 / math.sqrt(in_dim)
        return jax.random.uniform(k, (out_dim, in_dim), jnp.float32, -bound, bound)

    params = dict(
        wq=lin(keys[0], H * hd, D),
        wk=lin(keys[1], Hkv * hd, D),
        wv=lin(keys[2], Hkv * hd, D),
        wo=lin(keys[3], D, H * hd),
        w1=lin(keys[4], hidden, D),      # input_layer
        w2=lin(keys[5], D, hidden),      # output_layer
        w3=lin(keys[6], hidden, D),      # gate_layer
        attn_norm_w=jnp.ones((D,), jnp.float32),
        ffn_norm_w=jnp.ones((D,), jnp.float32),
    )
    return params, hidden


def prepare_weights(params, settings):
    """One-time: fold 1/sqrt(hd) into wq, fuse QKV, transpose to (in,out), bf16."""
    D = settings["model_dimension"]
    H = settings["number_of_heads"]
    hd = D // H
    wq_scaled = params["wq"] * (1.0 / math.sqrt(hd))      # commutes with RoPE -> exact
    wqkv = jnp.concatenate([wq_scaled, params["wk"], params["wv"]], axis=0)
    # TODO(synk): optional fp8 (v7x) / int8 (v5e/v6e) weight storage not implemented.
    return dict(
        wqkv_t=jnp.asarray(wqkv.T, jnp.bfloat16),
        wo_t=jnp.asarray(params["wo"].T, jnp.bfloat16),
        w1_t=jnp.asarray(params["w1"].T, jnp.bfloat16),
        w3_t=jnp.asarray(params["w3"].T, jnp.bfloat16),
        w2_t=jnp.asarray(params["w2"].T, jnp.bfloat16),
        attn_norm_w=params["attn_norm_w"].reshape(1, -1),
        ffn_norm_w=params["ffn_norm_w"].reshape(1, -1),
    )


def decoder_forward(weights, x, start_position, k_cache, v_cache,
                    cos_tab, sin_tab, settings, mask=None):
    # x: (B, S, D) f32; caches: (Bmax, Smax, Hkv, hd) bf16; returns f32 out + caches.
    B, S, D = x.shape
    H = settings["number_of_heads"]
    Hkv = settings["number_of_kv_heads"]
    hd = D // H
    Dq = H * hd
    Dk = Hkv * hd

    x2d = x.reshape(B * S, D)

    # RoPE tables arranged per-QKV-column (identity, cos=1 / sin=0, on V columns)
    c = cos_tab[start_position:start_position + S, :hd // 2]
    s = sin_tab[start_position:start_position + S, :hd // 2]
    cos_h = jnp.repeat(c, 2, axis=1)                      # (S, hd) interleaved
    sin_h = jnp.repeat(s, 2, axis=1)
    cos_row = jnp.concatenate(
        [jnp.tile(cos_h, (1, H + Hkv)), jnp.ones((S, Dk), jnp.float32)], axis=1)
    sin_row = jnp.concatenate(
        [jnp.tile(sin_h, (1, H + Hkv)), jnp.zeros((S, Dk), jnp.float32)], axis=1)
    cos_full = jnp.tile(cos_row, (B, 1))                  # (B*S, Dout)
    sin_full = jnp.tile(sin_row, (B, 1))

    # fused RMSNorm + QKV projection + RoPE  ->  (B*S, Dout) bf16
    qkv = norm_qkv_rope(x2d, weights["attn_norm_w"], weights["wqkv_t"],
                        cos_full, sin_full, qk_cols=Dq + Dk)

    q = qkv[:, :Dq].reshape(B, S, H, hd)                  # free reshapes, no transpose
    k_new = qkv[:, Dq:Dq + Dk].reshape(B, S, Hkv, hd)
    v_new = qkv[:, Dq + Dk:].reshape(B, S, Hkv, hd)

    # bf16 KV cache in (Bmax, Smax, Hkv, hd) layout: single slice update, no transpose
    k_cache = lax.dynamic_update_slice(k_cache, k_new, (0, start_position, 0, 0))
    v_cache = lax.dynamic_update_slice(v_cache, v_new, (0, start_position, 0, 0))
    k_all = k_cache[:B, :start_position + S]
    v_all = v_cache[:B, :start_position + S]

    attn = sdpa(q, k_all, v_all)                          # (B, S, H, hd) bf16
    # WO projection with the residual add fused into the epilogue
    h2d = linear_residual(attn.reshape(B * S, Dq), weights["wo_t"], x2d)

    # fused RMSNorm + SwiGLU FFN + residual
    out2d = norm_ffn_residual(h2d, weights["ffn_norm_w"],
                              weights["w1_t"], weights["w3_t"], weights["w2_t"])
    return out2d.reshape(B, S, D), k_cache, v_cache


# ------------------------- pure-JAX f32 reference ----------------------------

def reference_forward(params, x, start, settings):
    B, S, D = x.shape
    H = settings["number_of_heads"]
    Hkv = settings["number_of_kv_heads"]
    hd = D // H
    rep = H // Hkv
    Bmax = settings["batch_size_limit"]
    Smax = settings["sequence_lenght_limit"]
    cos_tab, sin_tab = rope_tables(D, Smax)

    def rms(t, w):
        return t * lax.rsqrt(jnp.mean(t * t, -1, keepdims=True) + EPS) * w

    def rope(t):
        c = cos_tab[start:start + S, :hd // 2]
        s = sin_tab[start:start + S, :hd // 2]
        te, to = t[..., 0::2], t[..., 1::2]
        return jnp.stack([te * c - to * s, te * s + to * c], -1).reshape(t.shape)

    def split_heads(t, n):
        return t.reshape(B, S, n, -1).transpose(0, 2, 1, 3)

    def concat_heads(t):
        return t.transpose(0, 2, 1, 3).reshape(B, S, -1)

    xn = rms(x, params["attn_norm_w"])
    q = split_heads(xn @ params["wq"].T, H)
    k = split_heads(xn @ params["wk"].T, Hkv)
    v = split_heads(xn @ params["wv"].T, Hkv)
    q, k = rope(q), rope(k)
    kc = jnp.zeros((Bmax, Hkv, Smax, hd), jnp.float32)
    vc = jnp.zeros_like(kc)
    kc = lax.dynamic_update_slice(kc, k, (0, 0, start, 0))
    vc = lax.dynamic_update_slice(vc, v, (0, 0, start, 0))
    kk = jnp.repeat(kc[:B, :, :start + S], rep, axis=1)
    vv = jnp.repeat(vc[:B, :, :start + S], rep, axis=1)
    sc = jnp.einsum("bhqd,bhkd->bhqk", q, kk) / math.sqrt(hd)
    a = jnp.einsum("bhqk,bhkd->bhqd", jax.nn.softmax(sc, axis=-1), vv)
    h = x + concat_heads(a) @ params["wo"].T
    hn = rms(h, params["ffn_norm_w"])
    u = hn @ params["w1"].T
    g = hn @ params["w3"].T
    return h + (u * jax.nn.sigmoid(u) * g) @ params["w2"].T


# ------------------------------- main ----------------------------------------

if __name__ == "__main__":
    settings = dict(
        model_dimension=32,
        hidden_dimension=64,
        number_of_heads=4,
        number_of_kv_heads=2,
        batch_size_limit=2,
        sequence_lenght_limit=16,
        multiple_of=32,
    )

    key = jax.random.PRNGKey(0)
    kp, kx = jax.random.split(key)
    params, hidden_dim = init_params(kp, settings)

    D = settings["model_dimension"]
    H = settings["number_of_heads"]
    Hkv = settings["number_of_kv_heads"]
    hd = D // H
    B, S = 2, 8
    x = jax.random.normal(kx, (B, S, D), jnp.float32)

    weights = prepare_weights(params, settings)

    # bf16 KV caches in (Bmax, Smax, Hkv, hd) layout (halves cache HBM traffic)
    k_cache = jnp.zeros((settings["batch_size_limit"],
                         settings["sequence_lenght_limit"], Hkv, hd), jnp.bfloat16)
    v_cache = jnp.zeros_like(k_cache)

    cos_tab, sin_tab = rope_tables(D, settings["sequence_lenght_limit"])

    out, k_cache, v_cache = decoder_forward(
        weights, x, 0, k_cache, v_cache, cos_tab, sin_tab, settings, mask=None)
    jax.block_until_ready(out)

    assert out.shape == (B, S, D) and out.dtype == jnp.float32
    assert bool(jnp.all(jnp.isfinite(out)))

    # loose tolerance vs the f32 reference (bf16 cache/activations + approx recip)
    ref = reference_forward(params, x, 0, settings)
    max_diff = float(jnp.max(jnp.abs(out - ref)))
    assert max_diff < 0.3, f"mismatch vs f32 reference: {max_diff}"

    print("KERNEL_OK")
</pallas_src>

<mosaic_0001>
module attributes {stable_mosaic.version = 11 : i64} {
  func.func @_norm_qkv_rope_kernel(%arg0: i32, %arg1: i32, %arg2: memref<16x32xf32, #tpu.memory_space<vmem>>, %arg3: memref<1x32xf32, #tpu.memory_space<vmem>>, %arg4: memref<32x64xbf16, #tpu.memory_space<vmem>>, %arg5: memref<16x64xf32, #tpu.memory_space<vmem>>, %arg6: memref<16x64xf32, #tpu.memory_space<vmem>>, %arg7: memref<64x64xbf16, #tpu.memory_space<vmem>>, %arg8: memref<16x64xbf16, #tpu.memory_space<vmem>>, %arg9: memref<16x32xbf16, #tpu.memory_space<vmem>>) attributes {dimension_semantics = [#tpu.dimension_semantics<parallel>, #tpu.dimension_semantics<arbitrary>], iteration_bounds = array<i64: 1, 1>, scalar_prefetch = 0 : i64, scratch_operands = 1 : i64, tpu.core_type = #tpu.core_type<tc>, window_params = [{transform_indices = @transform_0, window_bounds = array<i64: 16, 32>}, {pipeline_mode = #tpu.pipeline_mode<synchronous>, transform_indices = @transform_1, window_bounds = array<i64: 1, 32>}, {transform_indices = @transform_2, window_bounds = array<i64: 32, 64>}, {transform_indices = @transform_3, window_bounds = array<i64: 16, 64>}, {transform_indices = @transform_4, window_bounds = array<i64: 16, 64>}, {pipeline_mode = #tpu.pipeline_mode<synchronous>, transform_indices = @transform_5, window_bounds = array<i64: 64, 64>}, {transform_indices = @transform_6, window_bounds = array<i64: 16, 64>}]} {
    %c0_i32 = arith.constant 0 : i32
    %0 = arith.cmpi eq, %arg1, %c0_i32 : i32
    %1 = arith.extui %0 : i1 to i32
    %c0_i32_0 = arith.constant 0 : i32
    %2 = arith.cmpi ne, %1, %c0_i32_0 : i32
    scf.if %2 {
      %c0_8 = arith.constant 0 : index
      %c0_9 = arith.constant 0 : index
      %14 = vector.load %arg2[%c0_8, %c0_9] : memref<16x32xf32, #tpu.memory_space<vmem>>, vector<16x32xf32>
      %15 = arith.mulf %14, %14 : vector<16x32xf32>
      %cst_10 = arith.constant dense<0.000000e+00> : vector<16xf32>
      %16 = vector.multi_reduction <add>, %15, %cst_10 [1] : vector<16x32xf32> to vector<16xf32>
      %17 = vector.shape_cast %16 : vector<16xf32> to vector<16x1xf32>
      %cst_11 = arith.constant 3.200000e+01 : f32
      %18 = vector.broadcast %cst_11 : f32 to vector<16x1xf32>
      %19 = arith.divf %17, %18 : vector<16x1xf32>
      %cst_12 = arith.constant 9.99999974E-6 : f32
      %20 = vector.broadcast %cst_12 : f32 to vector<16x1xf32>
      %21 = arith.addf %19, %20 : vector<16x1xf32>
      %22 = math.rsqrt %21 : vector<16x1xf32>
      %23 = vector.broadcast %22 : vector<16x1xf32> to vector<16x32xf32>
      %24 = arith.mulf %14, %23 : vector<16x32xf32>
      %c0_13 = arith.constant 0 : index
      %c0_14 = arith.constant 0 : index
      %25 = vector.load %arg3[%c0_13, %c0_14] : memref<1x32xf32, #tpu.memory_space<vmem>>, vector<1x32xf32>
      %26 = vector.broadcast %25 : vector<1x32xf32> to vector<16x32xf32>
      %27 = arith.mulf %24, %26 : vector<16x32xf32>
      %28 = arith.truncf %27 : vector<16x32xf32> to vector<16x32xbf16>
      %c0_15 = arith.constant 0 : index
      %c0_16 = arith.constant 0 : index
      %29 = vector.load %arg9[%c0_15, %c0_16] : memref<16x32xbf16, #tpu.memory_space<vmem>>, vector<16x32xbf16>
      tpu.vector_store %arg9[%c0_15, %c0_16], %28 {strides = array<i32>} : memref<16x32xbf16, #tpu.memory_space<vmem>>, vector<16x32xbf16>,
    } else {
    }
    %c0 = arith.constant 0 : index
    %c0_1 = arith.constant 0 : index
    %3 = vector.load %arg9[%c0, %c0_1] : memref<16x32xbf16, #tpu.memory_space<vmem>>, vector<16x32xbf16>
    %c0_2 = arith.constant 0 : index
    %c0_3 = arith.constant 0 : index
    %4 = vector.load %arg4[%c0_2, %c0_3] : memref<32x64xbf16, #tpu.memory_space<vmem>>, vector<32x64xbf16>
    %cst = arith.constant dense<0.000000e+00> : vector<16x64xf32>
    %5 = tpu.matmul %3, %4, %cst {dimension_numbers = #tpu.dot_dimension_numbers<[1], [0], [0], [1], [0, 0, 1, 1], [], []>} : vector<16x32xbf16>, vector<32x64xbf16>, vector<16x64xf32> -> vector<16x64xf32>
    %c64_i32 = arith.constant 64 : i32
    %6 = arith.muli %arg1, %c64_i32 : i32
    %c48_i32 = arith.constant 48 : i32
    %7 = arith.cmpi slt, %6, %c48_i32 : i32
    %8 = arith.extui %7 : i1 to i32
    %c0_i32_4 = arith.constant 0 : i32
    %9 = arith.cmpi ne, %8, %c0_i32_4 : i32
    scf.if %9 {
      %14 = arith.truncf %5 : vector<16x64xf32> to vector<16x64xbf16>
      %c0_8 = arith.constant 0 : index
      %c0_9 = arith.constant 0 : index
      %15 = vector.load %arg7[%c0_8, %c0_9] : memref<64x64xbf16, #tpu.memory_space<vmem>>, vector<64x64xbf16>
      %cst_10 = arith.constant dense<0.000000e+00> : vector<16x64xf32>
      %16 = tpu.matmul %14, %15, %cst_10 {dimension_numbers = #tpu.dot_dimension_numbers<[1], [0], [0], [1], [0, 0, 1, 1], [], []>} : vector<16x64xbf16>, vector<64x64xbf16>, vector<16x64xf32> -> vector<16x64xf32>
      %c0_11 = arith.constant 0 : index
      %c0_12 = arith.constant 0 : index
      %17 = vector.load %arg5[%c0_11, %c0_12] : memref<16x64xf32, #tpu.memory_space<vmem>>, vector<16x64xf32>
      %18 = arith.mulf %5, %17 : vector<16x64xf32>
      %c0_13 = arith.constant 0 : index
      %c0_14 = arith.constant 0 : index
      %19 = vector.load %arg6[%c0_13, %c0_14] : memref<16x64xf32, #tpu.memory_space<vmem>>, vector<16x64xf32>
      %20 = arith.mulf %16, %19 : vector<16x64xf32>
      %21 = arith.addf %18, %20 : vector<16x64xf32>
      %22 = arith.truncf %21 : vector<16x64xf32> to vector<16x64xbf16>
      %c0_15 = arith.constant 0 : index
      %c0_16 = arith.constant 0 : index
      %23 = vector.load %arg8[%c0_15, %c0_16] : memref<16x64xbf16, #tpu.memory_space<vmem>>, vector<16x64xbf16>
      tpu.vector_store %arg8[%c0_15, %c0_16], %22 {strides = array<i32>} : memref<16x64xbf16, #tpu.memory_space<vmem>>, vector<16x64xbf16>,
    } else {
    }
    %c64_i32_5 = arith.constant 64 : i32
    %10 = arith.muli %arg1, %c64_i32_5 : i32
    %c48_i32_6 = arith.constant 48 : i32
    %11 = arith.cmpi sge, %10, %c48_i32_6 : i32
    %12 = arith.extui %11 : i1 to i32
    %c0_i32_7 = arith.constant 0 : i32
    %13 = arith.cmpi ne, %12, %c0_i32_7 : i32
    scf.if %13 {
      %14 = arith.truncf %5 : vector<16x64xf32> to vector<16x64xbf16>
      %c0_8 = arith.constant 0 : index
      %c0_9 = arith.constant 0 : index
      %15 = vector.load %arg8[%c0_8, %c0_9] : memref<16x64xbf16, #tpu.memory_space<vmem>>, vector<16x64xbf16>
      tpu.vector_store %arg8[%c0_8, %c0_9], %14 {strides = array<i32>} : memref<16x64xbf16, #tpu.memory_space<vmem>>, vector<16x64xbf16>,
    } else {
    }
    return
  }
  func.func @transform_0(%arg0: i32, %arg1: i32) -> (i32, i32) {
    %c0_i32 = arith.constant 0 : i32
    %c0_i32_0 = arith.constant 0 : i32
    return %arg0, %c0_i32 : i32, i32
  }
  func.func @transform_1(%arg0: i32, %arg1: i32) -> (i32, i32) {
    %c0_i32 = arith.constant 0 : i32
    %c0_i32_0 = arith.constant 0 : i32
    %c0_i32_1 = arith.constant 0 : i32
    return %c0_i32, %c0_i32_0 : i32, i32
  }
  func.func @transform_2(%arg0: i32, %arg1: i32) -> (i32, i32) {
    %c0_i32 = arith.constant 0 : i32
    %c0_i32_0 = arith.constant 0 : i32
    return %c0_i32, %arg1 : i32, i32
  }
  func.func @transform_3(%arg0: i32, %arg1: i32) -> (i32, i32) {
    %c0_i32 = arith.constant 0 : i32
    return %arg0, %arg1 : i32, i32
  }
  func.func @transform_4(%arg0: i32, %arg1: i32) -> (i32, i32) {
    %c0_i32 = arith.constant 0 : i32
    return %arg0, %arg1 : i32, i32
  }
  func.func @transform_5(%arg0: i32, %arg1: i32) -> (i32, i32) {
    %c0_i32 = arith.constant 0 : i32
    %c0_i32_0 = arith.constant 0 : i32
    %c0_i32_1 = arith.constant 0 : i32
    return %c0_i32, %c0_i32_0 : i32, i32
  }
  func.func @transform_6(%arg0: i32, %arg1: i32) -> (i32, i32) {
    %c0_i32 = arith.constant 0 : i32
    return %arg0, %arg1 : i32, i32
  }
}

</mosaic_0001>

<llo_original>
// kernel: tpu_custom_call.1
$region0: #{tpu_custom_call.1}
  #allocation0 [shape = 'u32[]', space=smem, size = 0x4, offset = 0x4, fixed_abs, tag = 'smem constant byte address 0x4 - core index']
  #allocation1 [shape = 'u32[144,128]{1,0:T(1,128)}', space=vmem, size = 0x12000, scoped, tag = 'internal scratch']
  #allocation2 [shape = 'bf16[16,32]{1,0:T(16,128)(2,1)}', space=vmem, size = 0x1000, scoped, tag = 'scratch operand']
  %s0 = inlined_call_operand.hbm [shape: f32[16,32], index: 0, kind: input, shape index: {}]
  %s1 = inlined_call_operand.vmem [shape: f32[1,32], index: 1, kind: input, shape index: {}]
  %s2 = inlined_call_operand.hbm [shape: bf16[32,64], index: 2, kind: input, shape index: {}]
  %s3 = inlined_call_operand.hbm [shape: f32[16,64], index: 3, kind: input, shape index: {}]
  %s4 = inlined_call_operand.hbm [shape: f32[16,64], index: 4, kind: input, shape index: {}]
  %s5 = inlined_call_operand.hbm [shape: bf16[64,64], index: 5, kind: input, shape index: {}]
  %s6 = inlined_call_operand.hbm [shape: bf16[16,64], index: 6, kind: output, shape index: {}]
  %s7 = sld [smem:[#allocation0]]
  $region66: #{tpu_custom_call.1} parent=0
    _
  %s9 = ssub.s32 1, %s7
  %s10 = scalar_select 0, %s9, %s7
  $region1: #{tpu_custom_call.1} parent=0
    #allocation3 [shape = 'u8[8192]{0}', space=vmem, size = 0x2000, scoped, tag = 'input window, operand 0, single buffered']
    #allocation4 [shape = 's32[1]{0}', space=sflag, size = 0x4, scoped, tag = 'scoped memory for tpu_custom_call.1']
    #allocation5 [shape = 's32[1]{0}', space=sflag, size = 0x4, scoped, tag = 'scoped memory for tpu_custom_call.1']
    #allocation6 [shape = 'u8[8192]{0}', space=vmem, size = 0x2000, scoped, tag = 'input window, operand 2, single buffered']
    #allocation7 [shape = 's32[1]{0}', space=sflag, size = 0x4, scoped, tag = 'scoped memory for tpu_custom_call.1']
    #allocation8 [shape = 'u8[8192]{0}', space=vmem, size = 0x2000, scoped, tag = 'input window, operand 3, single buffered']
    #allocation9 [shape = 'u8[8192]{0}', space=vmem, size = 0x2000, scoped, tag = 'input window, operand 4, single buffered']
    #allocation10 [shape = 's32[1]{0}', space=sflag, size = 0x4, scoped, tag = 'scoped memory for tpu_custom_call.1']
    #allocation11 [shape = 'u8[16384]{0}', space=vmem, size = 0x4000, scoped, tag = 'input window, operand 5, single buffered']
    #allocation12 [shape = 'u8[4096]{0}', space=vmem, size = 0x1000, scoped, tag = 'output window, operand 0, single buffered']
    %11 = vsyncpa [#allocation4], 0
    %12 = vsyncpa [#allocation7], 0
    %13 = vsyncpa [#allocation10], 0
    %14 = vsyncpa [#allocation5], 0
    // Predicated region
    $region2: #{tpu_custom_call.1} parent=1 // pred_check
      _
    $region3: #{tpu_custom_call.1} parent=1 // pred_check_branch
      %16 = sbr.rel (0) target = $region5
    $region4: #{tpu_custom_call.1} parent=1 // pred_region
      %s18 = ssub.s32 256, 256
      %19 = vsyncadd [#allocation4], %s18
      %s20 = sshll.u32 [#allocation3], 4
      %s21 = int_to_ptr.vmem [resolvable:$true] %s20
      %26 = dma.hbm_to_vmem [thread:$0]  %s0, 256, %s21, [#allocation4], 128, 128, 8
    $region5: #{tpu_custom_call.1} parent=1 // pred_fallthru
      _
    // Predicated region
    $region6: #{tpu_custom_call.1} parent=1 // pred_check
      _
    $region7: #{tpu_custom_call.1} parent=1 // pred_check_branch
      %28 = sbr.rel (0) target = $region9
    $region8: #{tpu_custom_call.1} parent=1 // pred_region
      _
    $region9: #{tpu_custom_call.1} parent=1 // pred_fallthru
      _
    // Predicated region
    $region10: #{tpu_custom_call.1} parent=1 // pred_check
      _
    $region11: #{tpu_custom_call.1} parent=1 // pred_check_branch
      %30 = sbr.rel (0) target = $region13
    $region12: #{tpu_custom_call.1} parent=1 // pred_region
      %s32 = ssub.s32 256, 256
      %33 = vsyncadd [#allocation7], %s32
      %s34 = sshll.u32 [#allocation6], 4
      %s35 = int_to_ptr.vmem [resolvable:$true] %s34
      %40 = dma.hbm_to_vmem [thread:$0]  %s2, 256, %s35, [#allocation7], 64, 64, 4
    $region13: #{tpu_custom_call.1} parent=1 // pred_fallthru
      _
    // Predicated region
    $region14: #{tpu_custom_call.1} parent=1 // pred_check
      _
    $region15: #{tpu_custom_call.1} parent=1 // pred_check_branch
      %42 = sbr.rel (0) target = $region17
    $region16: #{tpu_custom_call.1} parent=1 // pred_region
      %s44 = ssub.s32 256, 256
      %45 = vsyncadd [#allocation7], %s44
      %s46 = sshll.u32 [#allocation8], 4
      %s47 = int_to_ptr.vmem [resolvable:$true] %s46
      %52 = dma.hbm_to_vmem [thread:$0]  %s3, 256, %s47, [#allocation7], 128, 128, 8
    $region17: #{tpu_custom_call.1} parent=1 // pred_fallthru
      _
    // Predicated region
    $region18: #{tpu_custom_call.1} parent=1 // pred_check
      _
    $region19: #{tpu_custom_call.1} parent=1 // pred_check_branch
      %54 = sbr.rel (0) target = $region21
    $region20: #{tpu_custom_call.1} parent=1 // pred_region
      %s56 = ssub.s32 256, 256
      %57 = vsyncadd [#allocation10], %s56
      %s58 = sshll.u32 [#allocation9], 4
      %s59 = int_to_ptr.vmem [resolvable:$true] %s58
      %64 = dma.hbm_to_vmem [thread:$0]  %s4, 256, %s59, [#allocation10], 128, 128, 8
    $region21: #{tpu_custom_call.1} parent=1 // pred_fallthru
      _
    // Predicated region
    $region22: #{tpu_custom_call.1} parent=1 // pred_check
      _
    $region23: #{tpu_custom_call.1} parent=1 // pred_check_branch
      %66 = sbr.rel (0) target = $region25
    $region24: #{tpu_custom_call.1} parent=1 // pred_region
      %s68 = ssub.s32 512, 512
      %69 = vsyncadd [#allocation10], %s68
      %s70 = sshll.u32 [#allocation11], 4
      %s71 = int_to_ptr.vmem [resolvable:$true] %s70
      %76 = dma.hbm_to_vmem [thread:$0]  %s5, 512, %s71, [#allocation10], 64, 64, 4
    $region25: #{tpu_custom_call.1} parent=1 // pred_fallthru
      _
    // Predicated region
    $region26: #{tpu_custom_call.1} parent=1 // pred_check
      _
    $region27: #{tpu_custom_call.1} parent=1 // pred_check_branch
      %78 = sbr.rel (0) target = $region29
    $region28: #{tpu_custom_call.1} parent=1 // pred_region
      %79 = dma.done [#allocation4], 256
    $region29: #{tpu_custom_call.1} parent=1 // pred_fallthru
      _
    // Predicated region
    $region30: #{tpu_custom_call.1} parent=1 // pred_check
      _
    $region31: #{tpu_custom_call.1} parent=1 // pred_check_branch
      %81 = sbr.rel (0) target = $region33
    $region32: #{tpu_custom_call.1} parent=1 // pred_region
      %82 = dma.done [#allocation7], 256
    $region33: #{tpu_custom_call.1} parent=1 // pred_fallthru
      _
    // Predicated region
    $region34: #{tpu_custom_call.1} parent=1 // pred_check
      _
    $region35: #{tpu_custom_call.1} parent=1 // pred_check_branch
      %84 = sbr.rel (0) target = $region37
    $region36: #{tpu_custom_call.1} parent=1 // pred_region
      %85 = dma.done [#allocation7], 256
    $region37: #{tpu_custom_call.1} parent=1 // pred_fallthru
      _
    // Predicated region
    $region38: #{tpu_custom_call.1} parent=1 // pred_check
      _
    $region39: #{tpu_custom_call.1} parent=1 // pred_check_branch
      %87 = sbr.rel (0) target = $region41
    $region40: #{tpu_custom_call.1} parent=1 // pred_region
      %88 = dma.done [#allocation10], 256
    $region41: #{tpu_custom_call.1} parent=1 // pred_fallthru
      _
    // Predicated region
    $region42: #{tpu_custom_call.1} parent=1 // pred_check
      _
    $region43: #{tpu_custom_call.1} parent=1 // pred_check_branch
      %90 = sbr.rel (0) target = $region45
    $region44: #{tpu_custom_call.1} parent=1 // pred_region
      %91 = dma.done [#allocation10], 512
    $region45: #{tpu_custom_call.1} parent=1 // pred_fallthru
      _
    %p93 = scmp.eq.s32.totalorder 0, 0
    // Predicated region
    $region46: #{tpu_custom_call.1} parent=1 // pred_check
      %p94 = pneg %p93
    $region47: #{tpu_custom_call.1} parent=1 // pred_check_branch
      %96 = sbr.rel (%p94) target = $region49
    $region48: #{tpu_custom_call.1} parent=1 // pred_region
      %v97 = vld [vmem:[#allocation3] sm:$0xff]
      %v98 = vld [vmem:[#allocation3 + $0x8] sm:$0xff]
      %v99 = vmul.f32 %v97, %v97
      %v100 = vmul.f32 %v98, %v98
      %vm101 = vcmask 261120
      %v102 = vsel %vm101, %v99, 0.0
      %103 = vadd.xlane.f32.xlu0 %v102
      %v104 = vpop.xlane.xlu0 %103
      %v105 = vsel %vm101, %v100, 0.0
      %106 = vadd.xlane.f32.xlu0 %v105
      %v107 = vpop.xlane.xlu0 %106
      %v108 = vrcp.pop 32.0
      %v109 = vmul.f32 %v104, %v108
      %v110 = vmul.f32 %v107, %v108
      %v111 = vadd.f32 %v109, 1e-05
      %v112 = vadd.f32 %v110, 1e-05
      %v113 = vrsqrt.pop %v111
      %v114 = vrsqrt.pop %v112
      %v115 = vmul.f32 %v97, %v113
      %v116 = vmul.f32 %v98, %v114
      %v117 = vld [vmem:[%s1] sm:$0x1]
      %v119 = vlaneseq
      %v120 = vshrl.u32 %v119, 7
      %v121 = vsub.s32 0, %v120
      %v122 = vrot.slane %v117, %v121
      %v124 = vmul.f32 %v115, %v122
      %v125 = vmul.f32 %v116, %v122
      %v126 = vpack.c.bf16 %v125, %v124
      %127 = vst.msk [vmem:[#allocation2] sm:$0xff] %vm101, %v126
    $region49: #{tpu_custom_call.1} parent=1 // pred_fallthru
      _
    %v128 = vld [vmem:[#allocation2] sm:$0xff]
    %v129 = vld [vmem:[#allocation6] sm:$0xf]
    %v130 = vld [vmem:[#allocation6 + $0x4] sm:$0xf]
    %v131 = vld [vmem:[#allocation6 + $0x8] sm:$0xf]
    %v132 = vld [vmem:[#allocation6 + $0xc] sm:$0xf]
    %v137 = vunpack.c.l.b16 %v129
    %v138 = vunpack.c.l.b16 %v130
    %v139 = vunpack.c.l.b16 %v131
    %v140 = vunpack.c.l.b16 %v132
    %v141 = vpack.c.b16 %v138, %v137
    %v142 = vpack.c.b16 %v140, %v139
    %vm145 = vcmask 261120
    %v147 = vsel %vm145, %v128, 0
    %149 = vmatprep.subr.bf16.mxu0 0
    %150 = vmatpush1.bf16.msra.mxu0 %v141
    %151 = vmatprep.subr.bf16.mxu0 0
    %152 = vmatpush1.bf16.msra.mxu0 %v142
    %153 = vmatprep.subr.bf16.mxu0 0
    %154 = vmatpush1.bf16.msra.mxu0 0
    %155 = vmatprep.subr.bf16.mxu0 0
    %156 = vmatpush1.bf16.msra.mxu0 0
    %157 = vmatprep.subr.bf16.mxu0 0
    %158 = vmatpush1.bf16.msra.mxu0 0
    %159 = vmatprep.subr.bf16.mxu0 0
    %160 = vmatpush1.bf16.msra.mxu0 0
    %161 = vmatprep.subr.bf16.mxu0 0
    %162 = vmatpush1.bf16.msra.mxu0 0
    %163 = vmatprep.subr.bf16.mxu0 0
    %164 = vmatpush1.bf16.msra.mxu0 0
    %165 = vmatprep.subr.bf16.mxu0 0
    %166 = vmatpush1.bf16.msra.mxu0 0
    %167 = vmatprep.subr.bf16.mxu0 0
    %168 = vmatpush1.bf16.msra.mxu0 0
    %169 = vmatprep.subr.bf16.mxu0 0
    %170 = vmatpush1.bf16.msra.mxu0 0
    %171 = vmatprep.subr.bf16.mxu0 0
    %172 = vmatpush1.bf16.msra.mxu0 0
    %173 = vmatprep.subr.bf16.mxu0 0
    %174 = vmatpush1.bf16.msra.mxu0 0
    %175 = vmatprep.subr.bf16.mxu0 0
    %176 = vmatpush1.bf16.msra.mxu0 0
    %177 = vmatprep.subr.bf16.mxu0 0
    %178 = vmatpush1.bf16.msra.mxu0 0
    %179 = vmatprep.subr.bf16.mxu0 0
    %180 = vmatpush1.bf16.msra.mxu0 0
    %181 = vmatprep.mubr.bf16.mxu0 0
    %182 = vmatmul.mubr.bf16.gmra.mrb[0].mxu0 %v147
    %v183 = vpop.f32.mrb[0].mxu0
    %v184 = vadd.f32 0.0, %v183
    %v185 = vpop.f32.mrb[0].mxu0
    %v186 = vpop.f32.mrb[0].mxu0
    %v187 = vadd.f32 0.0, %v186
    %v188 = vpop.f32.mrb[0].mxu0
    %189 = vdwg.mxu0
    %s190 = smul.u32 0, 64
    %p191 = scmp.lt.s32.totalorder %s190, 48
    // Predicated region
    $region50: #{tpu_custom_call.1} parent=1 // pred_check
      %p192 = pneg %p191
    $region51: #{tpu_custom_call.1} parent=1 // pred_check_branch
      %194 = sbr.rel (%p192) target = $region53
    $region52: #{tpu_custom_call.1} parent=1 // pred_region
      %v195 = vpack.c.bf16 %v187, %v184
      %v196 = vld [vmem:[#allocation11] sm:$0xf]
      %v197 = vld [vmem:[#allocation11 + $0x4] sm:$0xf]
      %v198 = vld [vmem:[#allocation11 + $0x8] sm:$0xf]
      %v199 = vld [vmem:[#allocation11 + $0xc] sm:$0xf]
      %v200 = vld [vmem:[#allocation11 + $0x10] sm:$0xf]
      %v201 = vld [vmem:[#allocation11 + $0x14] sm:$0xf]
      %v202 = vld [vmem:[#allocation11 + $0x18] sm:$0xf]
      %v203 = vld [vmem:[#allocation11 + $0x1c] sm:$0xf]
      %v212 = vunpack.c.l.b16 %v196
      %v213 = vunpack.c.l.b16 %v197
      %v214 = vunpack.c.l.b16 %v198
      %v215 = vunpack.c.l.b16 %v199
      %v216 = vunpack.c.l.b16 %v200
      %v217 = vunpack.c.l.b16 %v201
      %v218 = vunpack.c.l.b16 %v202
      %v219 = vunpack.c.l.b16 %v203
      %v220 = vpack.c.b16 %v213, %v212
      %v221 = vpack.c.b16 %v215, %v214
      %v222 = vpack.c.b16 %v217, %v216
      %v223 = vpack.c.b16 %v219, %v218
      %vm228 = vcmask 523264
      %v230 = vsel %vm228, %v195, 0
      %232 = vmatprep.subr.bf16.mxu0 0
      %233 = vmatpush1.bf16.msra.mxu0 %v220
      %234 = vmatprep.subr.bf16.mxu0 0
      %235 = vmatpush1.bf16.msra.mxu0 %v221
      %236 = vmatprep.subr.bf16.mxu0 0
      %237 = vmatpush1.bf16.msra.mxu0 %v222
      %238 = vmatprep.subr.bf16.mxu0 0
      %239 = vmatpush1.bf16.msra.mxu0 %v223
      %240 = vmatprep.subr.bf16.mxu0 0
      %241 = vmatpush1.bf16.msra.mxu0 0
      %242 = vmatprep.subr.bf16.mxu0 0
      %243 = vmatpush1.bf16.msra.mxu0 0
      %244 = vmatprep.subr.bf16.mxu0 0
      %245 = vmatpush1.bf16.msra.mxu0 0
      %246 = vmatprep.subr.bf16.mxu0 0
      %247 = vmatpush1.bf16.msra.mxu0 0
      %248 = vmatprep.subr.bf16.mxu0 0
      %249 = vmatpush1.bf16.msra.mxu0 0
      %250 = vmatprep.subr.bf16.mxu0 0
      %251 = vmatpush1.bf16.msra.mxu0 0
      %252 = vmatprep.subr.bf16.mxu0 0
      %253 = vmatpush1.bf16.msra.mxu0 0
      %254 = vmatprep.subr.bf16.mxu0 0
      %255 = vmatpush1.bf16.msra.mxu0 0
      %256 = vmatprep.subr.bf16.mxu0 0
      %257 = vmatpush1.bf16.msra.mxu0 0
      %258 = vmatprep.subr.bf16.mxu0 0
      %259 = vmatpush1.bf16.msra.mxu0 0
      %260 = vmatprep.subr.bf16.mxu0 0
      %261 = vmatpush1.bf16.msra.mxu0 0
      %262 = vmatprep.subr.bf16.mxu0 0
      %263 = vmatpush1.bf16.msra.mxu0 0
      %264 = vmatprep.mubr.bf16.mxu0 0
      %265 = vmatmul.mubr.bf16.gmra.mrb[0].mxu0 %v230
      %v266 = vpop.f32.mrb[0].mxu0
      %v267 = vadd.f32 0.0, %v266
      %v268 = vpop.f32.mrb[0].mxu0
      %v269 = vpop.f32.mrb[0].mxu0
      %v270 = vadd.f32 0.0, %v269
      %v271 = vpop.f32.mrb[0].mxu0
      %272 = vdwg.mxu0
      %v273 = vld [vmem:[#allocation8] sm:$0xff]
      %v274 = vld [vmem:[#allocation8 + $0x8] sm:$0xff]
      %v275 = vmul.f32 %v184, %v273
      %v276 = vmul.f32 %v187, %v274
      %v277 = vld [vmem:[#allocation9] sm:$0xff]
      %v278 = vld [vmem:[#allocation9 + $0x8] sm:$0xff]
      %v279 = vmul.f32 %v267, %v277
      %v280 = vmul.f32 %v270, %v278
      %v281 = vadd.f32 %v275, %v279
      %v282 = vadd.f32 %v276, %v280
      %v283 = vpack.c.bf16 %v282, %v281
      %v285 = vunpack.c.l.b16 %v283
      %v286 = vunpack.c.h.b16 %v283
      %v287 = vpack.c.b16 %v285, %v285
      %v288 = vpack.c.b16 %v286, %v286
      %vm291 = vcmask 519168
      %292 = vst.msk [vmem:[#allocation12] sm:$0xf] %vm291, %v287
      %293 = vst.msk [vmem:[#allocation12 + $0x4] sm:$0xf] %vm291, %v288
    $region53: #{tpu_custom_call.1} parent=1 // pred_fallthru
      _
    %p294 = scmp.ge.s32.totalorder %s190, 48
    // Predicated region
    $region54: #{tpu_custom_call.1} parent=1 // pred_check
      %p295 = pneg %p294
    $region55: #{tpu_custom_call.1} parent=1 // pred_check_branch
      %297 = sbr.rel (%p295) target = $region57
    $region56: #{tpu_custom_call.1} parent=1 // pred_region
      %v298 = vpack.c.bf16 %v187, %v184
      %v300 = vunpack.c.l.b16 %v298
      %v301 = vunpack.c.h.b16 %v298
      %v302 = vpack.c.b16 %v300, %v300
      %v303 = vpack.c.b16 %v301, %v301
      %vm306 = vcmask 519168
      %307 = vst.msk [vmem:[#allocation12] sm:$0xf] %vm306, %v302
      %308 = vst.msk [vmem:[#allocation12 + $0x4] sm:$0xf] %vm306, %v303
    $region57: #{tpu_custom_call.1} parent=1 // pred_fallthru
      _
    // Predicated region
    $region58: #{tpu_custom_call.1} parent=1 // pred_check
      _
    $region59: #{tpu_custom_call.1} parent=1 // pred_check_branch
      %310 = sbr.rel (0) target = $region61
    $region60: #{tpu_custom_call.1} parent=1 // pred_region
      %s312 = ssub.s32 128, 128
      %313 = vsyncadd [#allocation5], %s312
      %s314 = sshll.u32 [#allocation12], 4
      %s315 = int_to_ptr.vmem [resolvable:$true] %s314
      %320 = dma.vmem_to_hbm [thread:$0]  %s315, 128, %s6, [#allocation5], 64, 64, 4
    $region61: #{tpu_custom_call.1} parent=1 // pred_fallthru
      _
    // Predicated region
    $region62: #{tpu_custom_call.1} parent=1 // pred_check
      _
    $region63: #{tpu_custom_call.1} parent=1 // pred_check_branch
      %322 = sbr.rel (0) target = $region65
    $region64: #{tpu_custom_call.1} parent=1 // pred_region
      %323 = dma.done [#allocation5], 128
    $region65: #{tpu_custom_call.1} parent=1 // pred_fallthru
      _
    %324 = vsyncpa [#allocation4], 1
    %325 = vsyncpa [#allocation7], 1
    %326 = vsyncpa [#allocation10], 1
    %327 = vsyncpa [#allocation5], 1

</llo_original>
